<compile_context>
chip_gen: v7x
topology: tpu7x:2x2x1
jax: 0.10.0
libtpu: 0.0.40
codegen_flags: <defaults>
</compile_context>

<pallas_src>
import math
from functools import partial

import jax
import jax.numpy as jnp
from jax import lax
from jax.experimental import pallas as pl
from jax.experimental.pallas import tpu as pltpu


def _round_up(x, m):
    return -(-x // m) * m


def _vmem_capacity_bytes():
    """Physical VMEM of the current TPU generation (conservative fallback)."""
    try:
        info = pltpu.get_tpu_info()
        cap = getattr(info, "vmem_capacity_bytes", None)
        if cap:
            return int(cap)
    except Exception:
        pass
    return 64 * 2 ** 20            # v7x per-TensorCore VMEM (safe lower bound)


def _conv_kernel(x_ref, w_ref, b_ref, o_ref, patch_ref, *, KQH, KQW, OW, Ce, P_pad):
    """One (batch, O-tile) grid step.

    x_ref:     (1, KQW, Ce, Lq)   pre-shifted, lane-flattened image planes (one image)
    w_ref:     (TO, K)            lane-dense weight tile, K = KQH*KQW*Ce
    b_ref:     (TO, 1)            f32 bias column
    o_ref:     (1, TO, P_pad)     lane-dense output tile
    patch_ref: (K, P_pad)         persistent im2col scratch (built once per image)
    """
    # Build the im2col patch only on the first O-tile of each image; later O-tiles
    # of the same image reuse it (O axis is "arbitrary", so within a core every
    # image starts at o == 0).
    @pl.when(pl.program_id(1) == 0)
    def _build_patch():
        for qh in range(KQH):
            for qw in range(KQW):
                t = qh * KQW + qw
                # Contiguous 2-D slice of the pre-shifted plane: lane offset qh*OW,
                # full-sublane (Ce-aligned) destination rows -> clean vector stores.
                patch_ref[t * Ce:(t + 1) * Ce, :] = (
                    x_ref[0, qw, :, qh * OW:qh * OW + P_pad])

    # One large MXU matmul over the whole receptive field; f32 accumulation.
    acc = jnp.dot(w_ref[...], patch_ref[...],
                  preferred_element_type=jnp.float32)          # (TO, P_pad)
    # Bias as a broadcast f32 VPU add (hidden under MXU slack).
    o_ref[0] = (acc + b_ref[...]).astype(o_ref.dtype)


def conv2d_static_same_padding(x, weight, bias=None, stride=(1, 1), *,
                               block_o=None, mxu_dtype=jnp.bfloat16):
    """Matches Conv2dStaticSamePadding.forward (groups=1, dilation=1)."""
    N, C, H, W = x.shape
    O, Cw, KH, KW = weight.shape
    assert Cw == C, "groups != 1 not supported"
    if isinstance(stride, int):
        stride = (stride, stride)
    if len(stride) == 1:
        stride = (stride[0], stride[0])
    sh, sw = int(stride[0]), int(stride[1])

    # --- SAME-padding arithmetic (identical to the PyTorch module) ---
    extra_h = (math.ceil(W / sw) - 1) * sw - W + KW
    extra_v = (math.ceil(H / sh) - 1) * sh - H + KH
    left = extra_h // 2
    right = extra_h - left
    top = extra_v // 2
    bottom = extra_v - top

    # F.pad with negative amounts crops; handle both signs explicitly.
    ct, cb = max(-top, 0), max(-bottom, 0)
    cl, cr = max(-left, 0), max(-right, 0)
    assert ct + cb < H and cl + cr < W, "SAME crop removes the whole image"
    xc = x[:, :, ct:H - cb, cl:W - cr]
    xp = jnp.pad(xc, ((0, 0), (0, 0),
                      (max(top, 0), max(bottom, 0)),
                      (max(left, 0), max(right, 0))))
    Hp, Wp = xp.shape[-2:]

    # Output extent of the strided valid conv on the padded image (== ceil(H/s)).
    OH = (Hp - KH) // sh + 1
    OW = (Wp - KW) // sw + 1

    # --- space-to-depth: fold the stride into channels so the kernel is stride-1 ---
    KQH = -(-KH // sh)                 # taps along H after folding
    KQW = -(-KW // sw)                 # taps along W after folding
    Hs, Ws = OH + KQH - 1, OW + KQW - 1
    Hp2, Wp2 = Hs * sh, Ws * sw
    # Resize the padded image to exactly (Hp2, Wp2): appended zeros only ever meet
    # zero-padded weight taps; cropped rows/cols are never accessed by the conv.
    xp = jnp.pad(xp, ((0, 0), (0, 0),
                      (0, max(0, Hp2 - Hp)),
                      (0, max(0, Wp2 - Wp))))[:, :, :Hp2, :Wp2]
    Ce = C * sh * sw

    # --- dtypes / alignment ---
    in_dtype = jnp.dtype(x.dtype) if mxu_dtype is None else jnp.dtype(mxu_dtype)
    in_isz = in_dtype.itemsize
    out_isz = jnp.dtype(x.dtype).itemsize
    row_align = 16 if in_isz == 2 else 8          # full sublane pack for tap writes
    Ce_pad = _round_up(Ce, row_align)
    K = KQH * KQW * Ce_pad

    P = OH * OW
    P_pad = _round_up(P, 128)                     # lane-dense patch/output columns
    Lq = _round_up((KQH - 1) * OW + P_pad, 128)   # shifted-plane length (lane dim)

    # --- O-tile selection + VMEM budget (generation-aware) ---
    cap = _vmem_capacity_bytes()
    O8 = _round_up(O, 8)
    x_blk = KQW * Ce_pad * Lq * in_isz            # per-image slab (single-buffered idx)
    patch_b = K * P_pad * in_isz

    def _budget(t):
        return (2 * x_blk + patch_b + 2 * t * K * in_isz
                + 2 * t * P_pad * out_isz + t * P_pad * 4 + 2 * t * 4)

    if block_o is not None:
        TO = _round_up(min(int(block_o), O8), 8)
    else:
        TO = min(128, O8)
        for cand in (256, 128, 64, 32, 16, 8):    # 256 fills v6e/v7x's 256-wide MXU
            t = min(cand, O8)
            if _budget(t) <= 0.7 * cap:
                TO = t
                break
        TO = _round_up(TO, 8)
    n_o = -(-O // TO)
    O_pad = n_o * TO

    blk_bytes = _budget(TO)
    vmem_limit = int(min(max(int(1.25 * blk_bytes), 32 * 2 ** 20), int(0.85 * cap)))

    # --- space-to-depth + channel pad ---
    xs = (xp.reshape(N, C, Hs, sh, Ws, sw)
            .transpose(0, 1, 3, 5, 2, 4)          # (N, C, rh, rw, Hs, Ws)
            .reshape(N, Ce, Hs, Ws))
    if Ce_pad != Ce:
        xs = jnp.pad(xs, ((0, 0), (0, Ce_pad - Ce), (0, 0), (0, 0)))

    # --- pre-shift along W into KQW lane-flattened planes:
    #     xq[n, qw, c, h*OW + ow] = xs[n, c, h, qw + ow]
    # so the in-kernel tap (qh, qw) is one contiguous slice at lane offset qh*OW. ---
    planes = [xs[:, :, :, qw:qw + OW].reshape(N, Ce_pad, Hs * OW) for qw in range(KQW)]
    xq = jnp.stack(planes, axis=1)                # (N, KQW, Ce_pad, Hs*OW)
    xq = jnp.pad(xq, ((0, 0), (0, 0), (0, 0), (0, Lq - Hs * OW)))
    xq = xq.astype(in_dtype)

    # --- weight: pad taps to (KQH*sh, KQW*sw), fold, flatten lane-dense to (O, K) ---
    wk = jnp.pad(weight, ((0, 0), (0, 0), (0, KQH * sh - KH), (0, KQW * sw - KW)))
    wk = wk.reshape(O, C, KQH, sh, KQW, sw).transpose(0, 2, 4, 1, 3, 5)  # (O,qh,qw,c,rh,rw)
    wk = wk.reshape(O, KQH * KQW, Ce)
    if Ce_pad != Ce:
        wk = jnp.pad(wk, ((0, 0), (0, 0), (0, Ce_pad - Ce)))
    wflat = wk.reshape(O, K)                      # column order = (qh, qw, c, rh, rw)

    b = bias if bias is not None else jnp.zeros((O,), dtype=jnp.float32)
    b_col = b.astype(jnp.float32).reshape(O, 1)   # bias stays f32 (post-matmul add)

    if O_pad != O:
        wflat = jnp.pad(wflat, ((0, O_pad - O), (0, 0)))
        b_col = jnp.pad(b_col, ((0, O_pad - O), (0, 0)))
    wflat = wflat.astype(in_dtype)

    kernel = partial(_conv_kernel, KQH=KQH, KQW=KQW, OW=OW, Ce=Ce_pad, P_pad=P_pad)

    out = pl.pallas_call(
        kernel,
        out_shape=jax.ShapeDtypeStruct((N, O_pad, P_pad), x.dtype),
        grid_spec=pltpu.PrefetchScalarGridSpec(
            num_scalar_prefetch=0,
            grid=(N, n_o),
            in_specs=[
                # whole-image slab: same block for every O-tile (no re-DMA across o)
                pl.BlockSpec((1, KQW, Ce_pad, Lq), lambda n, o: (n, 0, 0, 0)),
                pl.BlockSpec((TO, K), lambda n, o: (o, 0)),
                pl.BlockSpec((TO, 1), lambda n, o: (o, 0)),
            ],
            out_specs=pl.BlockSpec((1, TO, P_pad), lambda n, o: (n, o, 0)),
            scratch_shapes=[pltpu.VMEM((K, P_pad), in_dtype)],
        ),
        compiler_params=pltpu.CompilerParams(
            # O axis must be "arbitrary": the patch build is hoisted to o == 0, so the
            # O axis may not be core-split.  Batch axis stays "parallel" (megacore).
            dimension_semantics=("parallel", "arbitrary"),
            vmem_limit_bytes=vmem_limit,
        ),
        cost_estimate=pl.CostEstimate(
            flops=2 * N * O_pad * K * P_pad,
            transcendentals=0,
            bytes_accessed=int(xq.size * in_isz + wflat.size * in_isz
                               + O_pad * 4 + N * O_pad * P_pad * out_isz),
        ),
    )(xq, wflat, b_col)

    return out[:, :O, :P].reshape(N, O, OH, OW)


def _reference(x, weight, bias, stride):
    """Pure-JAX reference with the exact F.pad(+crop) + Conv2d semantics."""
    N, C, H, W = x.shape
    O, _, KH, KW = weight.shape
    sh, sw = stride
    extra_h = (math.ceil(W / sw) - 1) * sw - W + KW
    extra_v = (math.ceil(H / sh) - 1) * sh - H + KH
    left = extra_h // 2
    right = extra_h - left
    top = extra_v // 2
    bottom = extra_v - top
    ct, cb = max(-top, 0), max(-bottom, 0)
    cl, cr = max(-left, 0), max(-right, 0)
    xc = x[:, :, ct:H - cb, cl:W - cr]
    xp = jnp.pad(xc, ((0, 0), (0, 0),
                      (max(top, 0), max(bottom, 0)),
                      (max(left, 0), max(right, 0))))
    out = lax.conv_general_dilated(
        xp, weight, window_strides=(sh, sw), padding="VALID",
        dimension_numbers=("NCHW", "OIHW", "NCHW"),
        precision=lax.Precision.HIGHEST)
    if bias is not None:
        out = out + bias.reshape(1, O, 1, 1)
    return out


if __name__ == "__main__":
    key = jax.random.PRNGKey(0)

    N, C, H, W = 2, 4, 16, 16
    O = 8

    configs = [
        ((3, 3), (1, 1)),
        ((3, 3), (2, 2)),
        ((3, 3), (2, 1)),   # asymmetric stride
        ((1, 1), (2, 2)),   # exercises negative SAME padding (crop) path
    ]

    ok = True
    for idx, ((KH, KW), stride) in enumerate(configs):
        kx, kw, kb = jax.random.split(jax.random.fold_in(key, idx), 3)
        x = jax.random.normal(kx, (N, C, H, W), dtype=jnp.float32)
        weight = jax.random.normal(kw, (O, C, KH, KW), dtype=jnp.float32) * 0.1
        bias = jax.random.normal(kb, (O,), dtype=jnp.float32)

        ref = jax.block_until_ready(_reference(x, weight, bias, stride))

        # Default path: bf16 MXU inputs, f32 accumulation + f32 bias add.
        out_bf16 = jax.block_until_ready(
            conv2d_static_same_padding(x, weight, bias, stride))
        # f32 MXU path (exactness of the indexing / layout plumbing).
        out_f32 = jax.block_until_ready(
            conv2d_static_same_padding(x, weight, bias, stride, mxu_dtype=None))

        if out_bf16.shape != ref.shape or out_f32.shape != ref.shape:
            ok = False
            continue
        if not jnp.allclose(out_f32, ref, atol=2e-2, rtol=2e-2):
            ok = False
        if not jnp.allclose(out_bf16, ref, atol=6e-2, rtol=6e-2):
            ok = False

    print("KERNEL_OK" if ok else "KERNEL_MISMATCH")
</pallas_src>

<mosaic_0001>
module attributes {stable_mosaic.version = 11 : i64} {
  func.func @_conv_kernel(%arg0: i32, %arg1: i32, %arg2: memref<1x3x16x384xbf16, #tpu.memory_space<vmem>>, %arg3: memref<8x144xbf16, #tpu.memory_space<vmem>>, %arg4: memref<8x1xf32, #tpu.memory_space<vmem>>, %arg5: memref<1x8x256xf32, #tpu.memory_space<vmem>>, %arg6: memref<144x256xbf16, #tpu.memory_space<vmem>>) attributes {dimension_semantics = [#tpu.dimension_semantics<parallel>, #tpu.dimension_semantics<arbitrary>], iteration_bounds = array<i64: 2, 1>, scalar_prefetch = 0 : i64, scratch_operands = 1 : i64, tpu.core_type = #tpu.core_type<tc>, window_params = [{transform_indices = @transform_0, window_bounds = array<i64: 1, 3, 16, 384>}, {transform_indices = @transform_1, window_bounds = array<i64: 8, 144>}, {transform_indices = @transform_2, window_bounds = array<i64: 8, 1>}, {transform_indices = @transform_3, window_bounds = array<i64: 1, 8, 256>}]} {
    %c0_i32 = arith.constant 0 : i32
    %0 = arith.cmpi eq, %arg1, %c0_i32 : i32
    %1 = arith.extui %0 : i1 to i32
    %c0_i32_0 = arith.constant 0 : i32
    %2 = arith.cmpi ne, %1, %c0_i32_0 : i32
    scf.if %2 {
      %c0_9 = arith.constant 0 : index
      %c0_10 = arith.constant 0 : index
      %c0_11 = arith.constant 0 : index
      %c0_12 = arith.constant 0 : index
      %12 = vector.load %arg2[%c0_9, %c0_10, %c0_11, %c0_12] : memref<1x3x16x384xbf16, #tpu.memory_space<vmem>>, vector<1x1x16x256xbf16>
      %13 = vector.shape_cast %12 : vector<1x1x16x256xbf16> to vector<16x256xbf16>
      %c0_13 = arith.constant 0 : index
      %c0_14 = arith.constant 0 : index
      %14 = vector.load %arg6[%c0_13, %c0_14] : memref<144x256xbf16, #tpu.memory_space<vmem>>, vector<16x256xbf16>
      tpu.vector_store %arg6[%c0_13, %c0_14], %13 {strides = array<i32>} : memref<144x256xbf16, #tpu.memory_space<vmem>>, vector<16x256xbf16>,
      %c0_15 = arith.constant 0 : index
      %c1 = arith.constant 1 : index
      %c0_16 = arith.constant 0 : index
      %c0_17 = arith.constant 0 : index
      %15 = vector.load %arg2[%c0_15, %c1, %c0_16, %c0_17] : memref<1x3x16x384xbf16, #tpu.memory_space<vmem>>, vector<1x1x16x256xbf16>
      %16 = vector.shape_cast %15 : vector<1x1x16x256xbf16> to vector<16x256xbf16>
      %c16 = arith.constant 16 : index
      %c0_18 = arith.constant 0 : index
      %17 = vector.load %arg6[%c16, %c0_18] : memref<144x256xbf16, #tpu.memory_space<vmem>>, vector<16x256xbf16>
      tpu.vector_store %arg6[%c16, %c0_18], %16 {strides = array<i32>} : memref<144x256xbf16, #tpu.memory_space<vmem>>, vector<16x256xbf16>,
      %c0_19 = arith.constant 0 : index
      %c2 = arith.constant 2 : index
      %c0_20 = arith.constant 0 : index
      %c0_21 = arith.constant 0 : index
      %18 = vector.load %arg2[%c0_19, %c2, %c0_20, %c0_21] : memref<1x3x16x384xbf16, #tpu.memory_space<vmem>>, vector<1x1x16x256xbf16>
      %19 = vector.shape_cast %18 : vector<1x1x16x256xbf16> to vector<16x256xbf16>
      %c32 = arith.constant 32 : index
      %c0_22 = arith.constant 0 : index
      %20 = vector.load %arg6[%c32, %c0_22] : memref<144x256xbf16, #tpu.memory_space<vmem>>, vector<16x256xbf16>
      tpu.vector_store %arg6[%c32, %c0_22], %19 {strides = array<i32>} : memref<144x256xbf16, #tpu.memory_space<vmem>>, vector<16x256xbf16>,
      %c0_23 = arith.constant 0 : index
      %c0_24 = arith.constant 0 : index
      %c0_25 = arith.constant 0 : index
      %c16_26 = arith.constant 16 : index
      %21 = vector.load %arg2[%c0_23, %c0_24, %c0_25, %c16_26] : memref<1x3x16x384xbf16, #tpu.memory_space<vmem>>, vector<1x1x16x256xbf16>
      %22 = vector.shape_cast %21 : vector<1x1x16x256xbf16> to vector<16x256xbf16>
      %c48 = arith.constant 48 : index
      %c0_27 = arith.constant 0 : index
      %23 = vector.load %arg6[%c48, %c0_27] : memref<144x256xbf16, #tpu.memory_space<vmem>>, vector<16x256xbf16>
      tpu.vector_store %arg6[%c48, %c0_27], %22 {strides = array<i32>} : memref<144x256xbf16, #tpu.memory_space<vmem>>, vector<16x256xbf16>,
      %c0_28 = arith.constant 0 : index
      %c1_29 = arith.constant 1 : index
      %c0_30 = arith.constant 0 : index
      %c16_31 = arith.constant 16 : index
      %24 = vector.load %arg2[%c0_28, %c1_29, %c0_30, %c16_31] : memref<1x3x16x384xbf16, #tpu.memory_space<vmem>>, vector<1x1x16x256xbf16>
      %25 = vector.shape_cast %24 : vector<1x1x16x256xbf16> to vector<16x256xbf16>
      %c64 = arith.constant 64 : index
      %c0_32 = arith.constant 0 : index
      %26 = vector.load %arg6[%c64, %c0_32] : memref<144x256xbf16, #tpu.memory_space<vmem>>, vector<16x256xbf16>
      tpu.vector_store %arg6[%c64, %c0_32], %25 {strides = array<i32>} : memref<144x256xbf16, #tpu.memory_space<vmem>>, vector<16x256xbf16>,
      %c0_33 = arith.constant 0 : index
      %c2_34 = arith.constant 2 : index
      %c0_35 = arith.constant 0 : index
      %c16_36 = arith.constant 16 : index
      %27 = vector.load %arg2[%c0_33, %c2_34, %c0_35, %c16_36] : memref<1x3x16x384xbf16, #tpu.memory_space<vmem>>, vector<1x1x16x256xbf16>
      %28 = vector.shape_cast %27 : vector<1x1x16x256xbf16> to vector<16x256xbf16>
      %c80 = arith.constant 80 : index
      %c0_37 = arith.constant 0 : index
      %29 = vector.load %arg6[%c80, %c0_37] : memref<144x256xbf16, #tpu.memory_space<vmem>>, vector<16x256xbf16>
      tpu.vector_store %arg6[%c80, %c0_37], %28 {strides = array<i32>} : memref<144x256xbf16, #tpu.memory_space<vmem>>, vector<16x256xbf16>,
      %c0_38 = arith.constant 0 : index
      %c0_39 = arith.constant 0 : index
      %c0_40 = arith.constant 0 : index
      %c32_41 = arith.constant 32 : index
      %30 = vector.load %arg2[%c0_38, %c0_39, %c0_40, %c32_41] : memref<1x3x16x384xbf16, #tpu.memory_space<vmem>>, vector<1x1x16x256xbf16>
      %31 = vector.shape_cast %30 : vector<1x1x16x256xbf16> to vector<16x256xbf16>
      %c96 = arith.constant 96 : index
      %c0_42 = arith.constant 0 : index
      %32 = vector.load %arg6[%c96, %c0_42] : memref<144x256xbf16, #tpu.memory_space<vmem>>, vector<16x256xbf16>
      tpu.vector_store %arg6[%c96, %c0_42], %31 {strides = array<i32>} : memref<144x256xbf16, #tpu.memory_space<vmem>>, vector<16x256xbf16>,
      %c0_43 = arith.constant 0 : index
      %c1_44 = arith.constant 1 : index
      %c0_45 = arith.constant 0 : index
      %c32_46 = arith.constant 32 : index
      %33 = vector.load %arg2[%c0_43, %c1_44, %c0_45, %c32_46] : memref<1x3x16x384xbf16, #tpu.memory_space<vmem>>, vector<1x1x16x256xbf16>
      %34 = vector.shape_cast %33 : vector<1x1x16x256xbf16> to vector<16x256xbf16>
      %c112 = arith.constant 112 : index
      %c0_47 = arith.constant 0 : index
      %35 = vector.load %arg6[%c112, %c0_47] : memref<144x256xbf16, #tpu.memory_space<vmem>>, vector<16x256xbf16>
      tpu.vector_store %arg6[%c112, %c0_47], %34 {strides = array<i32>} : memref<144x256xbf16, #tpu.memory_space<vmem>>, vector<16x256xbf16>,
      %c0_48 = arith.constant 0 : index
      %c2_49 = arith.constant 2 : index
      %c0_50 = arith.constant 0 : index
      %c32_51 = arith.constant 32 : index
      %36 = vector.load %arg2[%c0_48, %c2_49, %c0_50, %c32_51] : memref<1x3x16x384xbf16, #tpu.memory_space<vmem>>, vector<1x1x16x256xbf16>
      %37 = vector.shape_cast %36 : vector<1x1x16x256xbf16> to vector<16x256xbf16>
      %c128 = arith.constant 128 : index
      %c0_52 = arith.constant 0 : index
      %38 = vector.load %arg6[%c128, %c0_52] : memref<144x256xbf16, #tpu.memory_space<vmem>>, vector<16x256xbf16>
      tpu.vector_store %arg6[%c128, %c0_52], %37 {strides = array<i32>} : memref<144x256xbf16, #tpu.memory_space<vmem>>, vector<16x256xbf16>,
    } else {
    }
    %c0 = arith.constant 0 : index
    %c0_1 = arith.constant 0 : index
    %3 = vector.load %arg3[%c0, %c0_1] : memref<8x144xbf16, #tpu.memory_space<vmem>>, vector<8x144xbf16>
    %c0_2 = arith.constant 0 : index
    %c0_3 = arith.constant 0 : index
    %4 = vector.load %arg6[%c0_2, %c0_3] : memref<144x256xbf16, #tpu.memory_space<vmem>>, vector<144x256xbf16>
    %cst = arith.constant dense<0.000000e+00> : vector<8x256xf32>
    %5 = tpu.matmul %3, %4, %cst {dimension_numbers = #tpu.dot_dimension_numbers<[1], [0], [0], [1], [0, 0, 1, 1], [], []>} : vector<8x144xbf16>, vector<144x256xbf16>, vector<8x256xf32> -> vector<8x256xf32>
    %c0_4 = arith.constant 0 : index
    %c0_5 = arith.constant 0 : index
    %6 = vector.load %arg4[%c0_4, %c0_5] : memref<8x1xf32, #tpu.memory_space<vmem>>, vector<8x1xf32>
    %7 = vector.broadcast %6 : vector<8x1xf32> to vector<8x256xf32>
    %8 = arith.addf %5, %7 : vector<8x256xf32>
    %c0_6 = arith.constant 0 : index
    %c0_7 = arith.constant 0 : index
    %c0_8 = arith.constant 0 : index
    %9 = vector.load %arg5[%c0_6, %c0_7, %c0_8] : memref<1x8x256xf32, #tpu.memory_space<vmem>>, vector<1x8x256xf32>
    %10 = vector.shape_cast %9 : vector<1x8x256xf32> to vector<8x256xf32>
    %11 = vector.shape_cast %8 : vector<8x256xf32> to vector<1x8x256xf32>
    tpu.vector_store %arg5[%c0_6, %c0_7, %c0_8], %11 {strides = array<i32>} : memref<1x8x256xf32, #tpu.memory_space<vmem>>, vector<1x8x256xf32>,
    return
  }
  func.func @transform_0(%arg0: i32, %arg1: i32) -> (i32, i32, i32, i32) {
    %c0_i32 = arith.constant 0 : i32
    %c0_i32_0 = arith.constant 0 : i32
    %c0_i32_1 = arith.constant 0 : i32
    %c0_i32_2 = arith.constant 0 : i32
    return %arg0, %c0_i32, %c0_i32_0, %c0_i32_1 : i32, i32, i32, i32
  }
  func.func @transform_1(%arg0: i32, %arg1: i32) -> (i32, i32) {
    %c0_i32 = arith.constant 0 : i32
    %c0_i32_0 = arith.constant 0 : i32
    return %arg1, %c0_i32 : i32, i32
  }
  func.func @transform_2(%arg0: i32, %arg1: i32) -> (i32, i32) {
    %c0_i32 = arith.constant 0 : i32
    %c0_i32_0 = arith.constant 0 : i32
    return %arg1, %c0_i32 : i32, i32
  }
  func.func @transform_3(%arg0: i32, %arg1: i32) -> (i32, i32, i32) {
    %c0_i32 = arith.constant 0 : i32
    %c0_i32_0 = arith.constant 0 : i32
    return %arg0, %arg1, %c0_i32 : i32, i32, i32
  }
}

</mosaic_0001>

<llo_original>
// kernel: tpu_custom_call.1
$region0: #{tpu_custom_call.1}
  #allocation0 [shape = 'u32[]', space=smem, size = 0x4, offset = 0x4, fixed_abs, tag = 'smem constant byte address 0x4 - core index']
  #allocation1 [shape = 'u32[144,128]{1,0:T(1,128)}', space=vmem, size = 0x12000, scoped, tag = 'internal scratch']
  #allocation2 [shape = 'bf16[144,256]{1,0:T(16,128)(2,1)}', space=vmem, size = 0x12000, scoped, tag = 'scratch operand']
  %s0 = inlined_call_operand.hbm [shape: bf16[2,3,16,384], index: 0, kind: input, shape index: {}]
  %s1 = inlined_call_operand.vmem [shape: bf16[8,144], index: 1, kind: input, shape index: {}]
  %s2 = inlined_call_operand.vmem [shape: f32[8,1], index: 2, kind: input, shape index: {}]
  %s3 = inlined_call_operand.hbm [shape: f32[2,8,256], index: 3, kind: output, shape index: {}]
  %s4 = sld [smem:[#allocation0]]
  $region53: #{tpu_custom_call.1} parent=0
    _
  %s6 = ssub.s32 1, %s4
  %s7 = scalar_select 0, %s6, %s4
  $region1: #{tpu_custom_call.1} parent=0
    #allocation3 [shape = 'u8[73728]{0}', space=vmem, size = 0x12000, scoped, tag = 'input window, operand 0']
    #allocation4 [shape = 's32[2]{0}', space=sflag, size = 0x8, scoped, tag = 'scoped memory for tpu_custom_call.1']
    #allocation5 [shape = 's32[2]{0}', space=sflag, size = 0x8, scoped, tag = 'scoped memory for tpu_custom_call.1']
    #allocation6 [shape = 'u8[16384]{0}', space=vmem, size = 0x4000, scoped, tag = 'output window, operand 0']
    %8 = vsyncpa [#allocation4], 0
    %s9 = scalar_lea.sflag [#allocation4], 1
    %10 = vsyncpa %s9, 0
    %11 = vsyncpa [#allocation5], 0
    %s12 = scalar_lea.sflag [#allocation5], 1
    %13 = vsyncpa %s12, 0
    loop: start=0, step=1, limit=4
    $region2: #{tpu_custom_call.1} parent=1 // loop_pre_header
      _
    $region3: #{tpu_custom_call.1} parent=1 // loop_header
      %s15 = sphi 0, %s19
      %p16 = scmp.ge.s32.totalorder %s15, 4
      %s22 = sphi 0, %s34
      %s23 = sphi 0, %s30
      %s24 = sphi 0, %s22
      %s25 = sphi 0, %s23
      %s26 = sphi 0, %s24
      %s27 = sphi 0, %s25
      %s37 = sphi 0, %s39
      %s40 = sphi 0, %s37
      %s41 = sphi 0, %s40
      %s57 = sphi 0, %s41
      %s63 = sphi 0, %s65
      %s66 = sphi 0, %s63
      %s67 = sphi 0, %s66
      %s83 = sphi 0, %s67
      %s89 = sphi 0, %s91
      %s92 = sphi 0, %s89
      %s93 = sphi 0, %s92
      %s109 = sphi 0, %s93
      %s117 = sphi 0, %s119
      %s120 = sphi 0, %s117
      %s121 = sphi 0, %s120
      %s137 = sphi 0, %s121
    $region4: #{tpu_custom_call.1} parent=1 // loop_header_branch
      %18 = sbr.rel (%p16) target = $region8
    $region5: #{tpu_custom_call.1} parent=1 // loop_body
      %s20 = ssub.s32 %s15, 1
      %s21 = ssub.s32 %s15, 2
      %s28 = sadd.s32 1, %s23
      %p29 = scmp.ge.s32.totalorder %s28, 1
      %s30 = scalar_select %p29, 0, %s28
      %s31 = sadd.s32 1, %s22
      %s32 = scalar_select %p29, %s31, %s22
      %p33 = scmp.ge.s32.totalorder %s32, 2
      %s34 = scalar_select %p33, 0, %s32
      %s35 = ssub.s32 %s22, %s34
      %p36 = scmp.eq.s32.totalorder %s35, 0
      %s38 = sadd.s32 %s37, 1
      %s39 = scalar_select %p36, %s37, %s38
      %p42 = pneg %p36
      %p43 = scmp.eq.s32.totalorder %s15, 1
      %p44 = por %p42, %p43
      %p45 = scmp.ne.s32.totalorder %s37, %s40
      %p46 = scmp.eq.s32.totalorder %s15, 0
      %p47 = por %p45, %p46
      %p48 = scmp.ne.s32.totalorder %s37, %s40
      %p49 = scmp.eq.s32.totalorder %s20, 1
      %p50 = por %p48, %p49
      %p51 = scmp.ne.s32.totalorder %s40, %s41
      %p52 = scmp.eq.s32.totalorder %s20, 0
      %p53 = por %p51, %p52
      %p54 = scmp.ne.s32.totalorder %s40, %s41
      %p55 = scmp.eq.s32.totalorder %s21, 1
      %p56 = por %p54, %p55
      %p58 = scmp.ne.s32.totalorder %s41, %s57
      %p59 = scmp.eq.s32.totalorder %s21, 0
      %p60 = por %p58, %p59
      %s61 = ssub.s32 %s23, %s30
      %p62 = scmp.eq.s32.totalorder %s61, 0
      %s64 = sadd.s32 %s63, 1
      %s65 = scalar_select %p62, %s63, %s64
      %p68 = pneg %p62
      %p69 = scmp.eq.s32.totalorder %s15, 1
      %p70 = por %p68, %p69
      %p71 = scmp.ne.s32.totalorder %s63, %s66
      %p72 = scmp.eq.s32.totalorder %s15, 0
      %p73 = por %p71, %p72
      %p74 = scmp.ne.s32.totalorder %s63, %s66
      %p75 = scmp.eq.s32.totalorder %s20, 1
      %p76 = por %p74, %p75
      %p77 = scmp.ne.s32.totalorder %s66, %s67
      %p78 = scmp.eq.s32.totalorder %s20, 0
      %p79 = por %p77, %p78
      %p80 = scmp.ne.s32.totalorder %s66, %s67
      %p81 = scmp.eq.s32.totalorder %s21, 1
      %p82 = por %p80, %p81
      %p84 = scmp.ne.s32.totalorder %s67, %s83
      %p85 = scmp.eq.s32.totalorder %s21, 0
      %p86 = por %p84, %p85
      %s87 = ssub.s32 %s23, %s30
      %p88 = scmp.eq.s32.totalorder %s87, 0
      %s90 = sadd.s32 %s89, 1
      %s91 = scalar_select %p88, %s89, %s90
      %p94 = pneg %p88
      %p95 = scmp.eq.s32.totalorder %s15, 1
      %p96 = por %p94, %p95
      %p97 = scmp.ne.s32.totalorder %s89, %s92
      %p98 = scmp.eq.s32.totalorder %s15, 0
      %p99 = por %p97, %p98
      %p100 = scmp.ne.s32.totalorder %s89, %s92
      %p101 = scmp.eq.s32.totalorder %s20, 1
      %p102 = por %p100, %p101
      %p103 = scmp.ne.s32.totalorder %s92, %s93
      %p104 = scmp.eq.s32.totalorder %s20, 0
      %p105 = por %p103, %p104
      %p106 = scmp.ne.s32.totalorder %s92, %s93
      %p107 = scmp.eq.s32.totalorder %s21, 1
      %p108 = por %p106, %p107
      %p110 = scmp.ne.s32.totalorder %s93, %s109
      %p111 = scmp.eq.s32.totalorder %s21, 0
      %p112 = por %p110, %p111
      %s113 = ssub.s32 %s22, %s34
      %s114 = ssub.s32 %s23, %s30
      %s115 = sor.u32 %s113, %s114
      %p116 = scmp.eq.s32.totalorder %s115, 0
      %s118 = sadd.s32 %s117, 1
      %s119 = scalar_select %p116, %s117, %s118
      %p122 = pneg %p116
      %p123 = scmp.eq.s32.totalorder %s15, 1
      %p124 = por %p122, %p123
      %p125 = scmp.ne.s32.totalorder %s117, %s120
      %p126 = scmp.eq.s32.totalorder %s15, 0
      %p127 = por %p125, %p126
      %p128 = scmp.ne.s32.totalorder %s117, %s120
      %p129 = scmp.eq.s32.totalorder %s20, 1
      %p130 = por %p128, %p129
      %p131 = scmp.ne.s32.totalorder %s120, %s121
      %p132 = scmp.eq.s32.totalorder %s20, 0
      %p133 = por %p131, %p132
      %p134 = scmp.ne.s32.totalorder %s120, %s121
      %p135 = scmp.eq.s32.totalorder %s21, 1
      %p136 = por %p134, %p135
      %p138 = scmp.ne.s32.totalorder %s121, %s137
      %p139 = scmp.eq.s32.totalorder %s21, 0
      %p140 = por %p138, %p139
      %p141 = scmp.le.s32.totalorder 1, %s15
      %p142 = scmp.lt.s32.totalorder %s15, 3
      %p143 = pnand %p141, %p142
      %p144 = pneg %p143
      // Predicated region
      $region9: #{tpu_custom_call.1} parent=5 // pred_check
        _
      $region10: #{tpu_custom_call.1} parent=5 // pred_check_branch
        %146 = sbr.rel (%p143) target = $region12
      $region11: #{tpu_custom_call.1} parent=5 // pred_region
        %s147 = ssub.s32 %s15, 1
        // Predicated region
        $region13: #{tpu_custom_call.1} parent=11 // pred_check
          %p148 = pneg %p79
        $region14: #{tpu_custom_call.1} parent=11 // pred_check_branch
          %150 = sbr.rel (%p148) target = $region16
        $region15: #{tpu_custom_call.1} parent=11 // pred_region
          %p151 = scmp.lt.s32.totalorder %s25, 0
          %s152 = scalar_select %p151, %s25, 0
          %s153 = smul.addr %s152, 2
          %s154 = smul.addr %s153, 4
          %s155 = scalar_lea.vmem %s1, %s154
        $region16: #{tpu_custom_call.1} parent=11 // pred_fallthru
          _
        // Predicated region
        $region17: #{tpu_custom_call.1} parent=11 // pred_check
          %p156 = pneg %p105
        $region18: #{tpu_custom_call.1} parent=11 // pred_check_branch
          %158 = sbr.rel (%p156) target = $region20
        $region19: #{tpu_custom_call.1} parent=11 // pred_region
          %p159 = scmp.lt.s32.totalorder %s25, 0
          %s160 = scalar_select %p159, %s25, 0
          %s161 = smul.addr %s160, 8
          %s162 = scalar_lea.vmem %s2, %s161
        $region20: #{tpu_custom_call.1} parent=11 // pred_fallthru
          _
      $region12: #{tpu_custom_call.1} parent=5 // pred_fallthru
        _
      %p163 = scmp.lt.s32.totalorder %s15, 2
      // Predicated region
      $region21: #{tpu_custom_call.1} parent=5 // pred_check
        %p164 = pneg %p163
      $region22: #{tpu_custom_call.1} parent=5 // pred_check_branch
        %166 = sbr.rel (%p164) target = $region24
      $region23: #{tpu_custom_call.1} parent=5 // pred_region
        // Predicated region
        $region25: #{tpu_custom_call.1} parent=23 // pred_check
          %p167 = pneg %p47
        $region26: #{tpu_custom_call.1} parent=23 // pred_check_branch
          %169 = sbr.rel (%p167) target = $region28
        $region27: #{tpu_custom_call.1} parent=23 // pred_region
          %s170 = sand.u32 %s37, 1
          %s171 = scalar_lea.sflag [#allocation4], %s170
          %s172 = sand.u32 %s37, 1
          %s173 = smul.addr %s172, 72
          %s174 = scalar_lea.vmem [#allocation3], %s173
          %s176 = ssub.s32 1152, 1152
          %177 = vsyncadd %s171, %s176
          %s178 = smul.addr %s22, 18
          %s179 = smul.addr %s178, 64
          %s180 = scalar_lea.hbm %s0, %s179
          %s181 = sshll.u32 %s174, 4
          %s182 = int_to_ptr.vmem [resolvable:$true] %s181
          %187 = dma.hbm_to_vmem [thread:$0]  %s180, 1152, %s182, %s171, 192, 192, 12
        $region28: #{tpu_custom_call.1} parent=23 // pred_fallthru
          _
      $region24: #{tpu_custom_call.1} parent=5 // pred_fallthru
        _
      %p188 = scmp.le.s32.totalorder 1, %s15
      %p189 = scmp.lt.s32.totalorder %s15, 3
      %p190 = pnand %p188, %p189
      %p191 = pneg %p190
      // Predicated region
      $region29: #{tpu_custom_call.1} parent=5 // pred_check
        _
      $region30: #{tpu_custom_call.1} parent=5 // pred_check_branch
        %193 = sbr.rel (%p190) target = $region32
      $region31: #{tpu_custom_call.1} parent=5 // pred_region
        %s194 = ssub.s32 %s15, 1
        %s195 = sand.u32 %s40, 1
        %s196 = scalar_lea.sflag [#allocation4], %s195
        %s197 = sand.u32 %s40, 1
        %s198 = smul.addr %s197, 72
        %s199 = scalar_lea.vmem [#allocation3], %s198
        // Predicated region
        $region33: #{tpu_custom_call.1} parent=31 // pred_check
          %p200 = pneg %p53
        $region34: #{tpu_custom_call.1} parent=31 // pred_check_branch
          %202 = sbr.rel (%p200) target = $region36
        $region35: #{tpu_custom_call.1} parent=31 // pred_region
          %203 = dma.done %s196, 1152
        $region36: #{tpu_custom_call.1} parent=31 // pred_fallthru
          _
        %s204 = sand.u32 %s40, 1
        %s205 = scalar_lea.sflag [#allocation4], %s204
        %s206 = sand.u32 %s40, 1
        %s207 = smul.addr %s206, 72
        %s208 = scalar_lea.vmem [#allocation3], %s207
        %p209 = pneg %p53
        %p210 = pneg %p50
        %p211 = scmp.lt.s32.totalorder %s25, 0
        %s212 = scalar_select %p211, %s25, 0
        %s213 = smul.addr %s212, 2
        %s214 = smul.addr %s213, 4
        %s215 = scalar_lea.vmem %s1, %s214
        %p216 = pneg %p79
        %p217 = pneg %p76
        %p218 = scmp.lt.s32.totalorder %s25, 0
        %s219 = scalar_select %p218, %s25, 0
        %s220 = smul.addr %s219, 8
        %s221 = scalar_lea.vmem %s2, %s220
        %p222 = pneg %p105
        %p223 = pneg %p102
        %p224 = pneg %p133
        %p225 = pneg %p130
        %s226 = sand.u32 %s120, 1
        %s227 = scalar_lea.sflag [#allocation5], %s226
        %s228 = sand.u32 %s120, 1
        %s229 = smul.addr %s228, 16
        %s230 = scalar_lea.vmem [#allocation6], %s229
        %p231 = scmp.lt.s32.totalorder %s25, 0
        %s232 = scalar_select %p231, %s25, 0
        %s233 = smul.addr %s232, 2
        %s234 = smul.addr %s233, 4
        %s235 = scalar_lea.vmem %s1, %s234
        %p236 = scmp.lt.s32.totalorder %s25, 0
        %s237 = scalar_select %p236, %s25, 0
        %s238 = smul.addr %s237, 8
        %s239 = scalar_lea.vmem %s2, %s238
        %p241 = scmp.eq.s32.totalorder %s25, 0
        // Predicated region
        $region37: #{tpu_custom_call.1} parent=31 // pred_check
          %p242 = pneg %p241
        $region38: #{tpu_custom_call.1} parent=31 // pred_check_branch
          %244 = sbr.rel (%p242) target = $region40
        $region39: #{tpu_custom_call.1} parent=31 // pred_region
          %v245 = vld [vmem:[%s199] sm:$0xff]
          %v246 = vld [vmem:[%s199 + $0xc] sm:$0xff]
          %v249 = vunpack.c.l.b16 %v245
          %v250 = vunpack.c.h.b16 %v245
          %v251 = vunpack.c.l.b16 %v246
          %v252 = vunpack.c.h.b16 %v246
          %v253 = vpack.c.b16 %v251, %v249
          %v254 = vpack.c.b16 %v252, %v250
          %257 = vst [vmem:[#allocation2] sm:$0xff] %v253
          %258 = vst [vmem:[#allocation2 + $0x8] sm:$0xff] %v254
          %s259 = scalar_lea.vmem %s199, 24 [#allocation3]
          %v260 = vld [vmem:[%s259] sm:$0xff]
          %v261 = vld [vmem:[%s259 + $0xc] sm:$0xff]
          %v264 = vunpack.c.l.b16 %v260
          %v265 = vunpack.c.h.b16 %v260
          %v266 = vunpack.c.l.b16 %v261
          %v267 = vunpack.c.h.b16 %v261
          %v268 = vpack.c.b16 %v266, %v264
          %v269 = vpack.c.b16 %v267, %v265
          %272 = vst [vmem:[#allocation2 + $0x10] sm:$0xff] %v268
          %273 = vst [vmem:[#allocation2 + $0x18] sm:$0xff] %v269
          %s274 = scalar_lea.vmem %s199, 48 [#allocation3]
          %v275 = vld [vmem:[%s274] sm:$0xff]
          %v276 = vld [vmem:[%s274 + $0xc] sm:$0xff]
          %v279 = vunpack.c.l.b16 %v275
          %v280 = vunpack.c.h.b16 %v275
          %v281 = vunpack.c.l.b16 %v276
          %v282 = vunpack.c.h.b16 %v276
          %v283 = vpack.c.b16 %v281, %v279
          %v284 = vpack.c.b16 %v282, %v280
          %287 = vst [vmem:[#allocation2 + $0x20] sm:$0xff] %v283
          %288 = vst [vmem:[#allocation2 + $0x28] sm:$0xff] %v284
          %v289 = vld [vmem:[%s199] sm:$0xff]
          %v290 = vld [vmem:[%s199 + $0x8] sm:$0xf]
          %v291 = vld [vmem:[%s199 + $0xc] sm:$0xff]
          %v292 = vld [vmem:[%s199 + $0x14] sm:$0xf]
          %v297 = vunpack.c.l.b16 %v289
          %v298 = vunpack.c.h.b16 %v289
          %v299 = vunpack.c.l.b16 %v290
          %v300 = vunpack.c.l.b16 %v291
          %v301 = vunpack.c.h.b16 %v291
          %v302 = vunpack.c.l.b16 %v292
          %v303 = vpack.c.b16 %v300, %v297
          %v304 = vpack.c.b16 %v301, %v298
          %v305 = vpack.c.b16 %v302, %v299
          %306 = vrot.lane.b32.xlu0 %v303, 112
          %v307 = vpop.permute.xlu0 %306
          %308 = vrot.lane.b32.xlu0 %v304, 112
          %v309 = vpop.permute.xlu0 %308
          %310 = vrot.lane.b32.xlu0 %v305, 112
          %v311 = vpop.permute.xlu0 %310
          %vm312 = vcmask 916480
          %v313 = vsel %vm312, %v307, %v309
          %v314 = vsel %vm312, %v309, %v311
          %317 = vst [vmem:[#allocation2 + $0x30] sm:$0xff] %v313
          %318 = vst [vmem:[#allocation2 + $0x38] sm:$0xff] %v314
          %v319 = vld [vmem:[%s259] sm:$0xff]
          %v320 = vld [vmem:[%s259 + $0x8] sm:$0xf]
          %v321 = vld [vmem:[%s259 + $0xc] sm:$0xff]
          %v322 = vld [vmem:[%s259 + $0x14] sm:$0xf]
          %v327 = vunpack.c.l.b16 %v319
          %v328 = vunpack.c.h.b16 %v319
          %v329 = vunpack.c.l.b16 %v320
          %v330 = vunpack.c.l.b16 %v321
          %v331 = vunpack.c.h.b16 %v321
          %v332 = vunpack.c.l.b16 %v322
          %v333 = vpack.c.b16 %v330, %v327
          %v334 = vpack.c.b16 %v331, %v328
          %v335 = vpack.c.b16 %v332, %v329
          %336 = vrot.lane.b32.xlu0 %v333, 112
          %v337 = vpop.permute.xlu0 %336
          %338 = vrot.lane.b32.xlu0 %v334, 112
          %v339 = vpop.permute.xlu0 %338
          %340 = vrot.lane.b32.xlu0 %v335, 112
          %v341 = vpop.permute.xlu0 %340
          %v342 = vsel %vm312, %v337, %v339
          %v343 = vsel %vm312, %v339, %v341
          %346 = vst [vmem:[#allocation2 + $0x40] sm:$0xff] %v342
          %347 = vst [vmem:[#allocation2 + $0x48] sm:$0xff] %v343
          %v348 = vld [vmem:[%s274] sm:$0xff]
          %v349 = vld [vmem:[%s274 + $0x8] sm:$0xf]
          %v350 = vld [vmem:[%s274 + $0xc] sm:$0xff]
          %v351 = vld [vmem:[%s274 + $0x14] sm:$0xf]
          %v356 = vunpack.c.l.b16 %v348
          %v357 = vunpack.c.h.b16 %v348
          %v358 = vunpack.c.l.b16 %v349
          %v359 = vunpack.c.l.b16 %v350
          %v360 = vunpack.c.h.b16 %v350
          %v361 = vunpack.c.l.b16 %v351
          %v362 = vpack.c.b16 %v359, %v356
          %v363 = vpack.c.b16 %v360, %v357
          %v364 = vpack.c.b16 %v361, %v358
          %365 = vrot.lane.b32.xlu0 %v362, 112
          %v366 = vpop.permute.xlu0 %365
          %367 = vrot.lane.b32.xlu0 %v363, 112
          %v368 = vpop.permute.xlu0 %367
          %369 = vrot.lane.b32.xlu0 %v364, 112
          %v370 = vpop.permute.xlu0 %369
          %v371 = vsel %vm312, %v366, %v368
          %v372 = vsel %vm312, %v368, %v370
          %375 = vst [vmem:[#allocation2 + $0x50] sm:$0xff] %v371
          %376 = vst [vmem:[#allocation2 + $0x58] sm:$0xff] %v372
          %v377 = vld [vmem:[%s199] sm:$0xff]
          %v378 = vld [vmem:[%s199 + $0x8] sm:$0xf]
          %v379 = vld [vmem:[%s199 + $0xc] sm:$0xff]
          %v380 = vld [vmem:[%s199 + $0x14] sm:$0xf]
          %v385 = vunpack.c.l.b16 %v377
          %v386 = vunpack.c.h.b16 %v377
          %v387 = vunpack.c.l.b16 %v378
          %v388 = vunpack.c.l.b16 %v379
          %v389 = vunpack.c.h.b16 %v379
          %v390 = vunpack.c.l.b16 %v380
          %v391 = vpack.c.b16 %v388, %v385
          %v392 = vpack.c.b16 %v389, %v386
          %v393 = vpack.c.b16 %v390, %v387
          %394 = vrot.lane.b32.xlu0 %v391, 96
          %v395 = vpop.permute.xlu0 %394
          %396 = vrot.lane.b32.xlu0 %v392, 96
          %v397 = vpop.permute.xlu0 %396
          %398 = vrot.lane.b32.xlu0 %v393, 96
          %v399 = vpop.permute.xlu0 %398
          %vm400 = vcmask 785408
          %v401 = vsel %vm400, %v395, %v397
          %v402 = vsel %vm400, %v397, %v399
          %405 = vst [vmem:[#allocation2 + $0x60] sm:$0xff] %v401
          %406 = vst [vmem:[#allocation2 + $0x68] sm:$0xff] %v402
          %v407 = vld [vmem:[%s259] sm:$0xff]
          %v408 = vld [vmem:[%s259 + $0x8] sm:$0xf]
          %v409 = vld [vmem:[%s259 + $0xc] sm:$0xff]
          %v410 = vld [vmem:[%s259 + $0x14] sm:$0xf]
          %v415 = vunpack.c.l.b16 %v407
          %v416 = vunpack.c.h.b16 %v407
          %v417 = vunpack.c.l.b16 %v408
          %v418 = vunpack.c.l.b16 %v409
          %v419 = vunpack.c.h.b16 %v409
          %v420 = vunpack.c.l.b16 %v410
          %v421 = vpack.c.b16 %v418, %v415
          %v422 = vpack.c.b16 %v419, %v416
          %v423 = vpack.c.b16 %v420, %v417
          %424 = vrot.lane.b32.xlu0 %v421, 96
          %v425 = vpop.permute.xlu0 %424
          %426 = vrot.lane.b32.xlu0 %v422, 96
          %v427 = vpop.permute.xlu0 %426
          %428 = vrot.lane.b32.xlu0 %v423, 96
          %v429 = vpop.permute.xlu0 %428
          %v430 = vsel %vm400, %v425, %v427
          %v431 = vsel %vm400, %v427, %v429
          %434 = vst [vmem:[#allocation2 + $0x70] sm:$0xff] %v430
          %435 = vst [vmem:[#allocation2 + $0x78] sm:$0xff] %v431
          %v436 = vld [vmem:[%s274] sm:$0xff]
          %v437 = vld [vmem:[%s274 + $0x8] sm:$0xf]
          %v438 = vld [vmem:[%s274 + $0xc] sm:$0xff]
          %v439 = vld [vmem:[%s274 + $0x14] sm:$0xf]
          %v444 = vunpack.c.l.b16 %v436
          %v445 = vunpack.c.h.b16 %v436
          %v446 = vunpack.c.l.b16 %v437
          %v447 = vunpack.c.l.b16 %v438
          %v448 = vunpack.c.h.b16 %v438
          %v449 = vunpack.c.l.b16 %v439
          %v450 = vpack.c.b16 %v447, %v444
          %v451 = vpack.c.b16 %v448, %v445
          %v452 = vpack.c.b16 %v449, %v446
          %453 = vrot.lane.b32.xlu0 %v450, 96
          %v454 = vpop.permute.xlu0 %453
          %455 = vrot.lane.b32.xlu0 %v451, 96
          %v456 = vpop.permute.xlu0 %455
          %457 = vrot.lane.b32.xlu0 %v452, 96
          %v458 = vpop.permute.xlu0 %457
          %v459 = vsel %vm400, %v454, %v456
          %v460 = vsel %vm400, %v456, %v458
          %463 = vst [vmem:[#allocation2 + $0x80] sm:$0xff] %v459
          %464 = vst [vmem:[#allocation2 + $0x88] sm:$0xff] %v460
        $region40: #{tpu_custom_call.1} parent=31 // pred_fallthru
          _
        %v465 = vld [vmem:[%s235] sm:$0xff]
        %v466 = vld [vmem:[#allocation2] sm:$0xff]
        %v467 = vld [vmem:[#allocation2 + $0x8] sm:$0xff]
        %v468 = vld [vmem:[#allocation2 + $0x10] sm:$0xff]
        %v469 = vld [vmem:[#allocation2 + $0x18] sm:$0xff]
        %v470 = vld [vmem:[#allocation2 + $0x20] sm:$0xff]
        %v471 = vld [vmem:[#allocation2 + $0x28] sm:$0xff]
        %v472 = vld [vmem:[#allocation2 + $0x30] sm:$0xff]
        %v473 = vld [vmem:[#allocation2 + $0x38] sm:$0xff]
        %v474 = vld [vmem:[#allocation2 + $0x40] sm:$0xff]
        %v475 = vld [vmem:[#allocation2 + $0x48] sm:$0xff]
        %v476 = vld [vmem:[#allocation2 + $0x50] sm:$0xff]
        %v477 = vld [vmem:[#allocation2 + $0x58] sm:$0xff]
        %v478 = vld [vmem:[#allocation2 + $0x60] sm:$0xff]
        %v479 = vld [vmem:[#allocation2 + $0x68] sm:$0xff]
        %v480 = vld [vmem:[#allocation2 + $0x70] sm:$0xff]
        %v481 = vld [vmem:[#allocation2 + $0x78] sm:$0xff]
        %v482 = vld [vmem:[#allocation2 + $0x80] sm:$0xff]
        %v483 = vld [vmem:[#allocation2 + $0x88] sm:$0xff]
        %v484 = vld [vmem:[%s239] sm:$0xff]
        %486 = vset.pattern.permute.xlu0 0
        %487 = vperm.xlu0 %486, %v484
        %v488 = vpop.permute.xlu0 %487
        %v491 = vunpack.c.l.b16 %v465
        %v492 = vunpack.c.h.b16 %v465
        %v493 = vpack.c.b16 %v491, %v491
        %v494 = vpack.c.b16 %v492, %v492
        %vm496 = vcmask 130048
        %v498 = vsel %vm496, %v494, 0
        %500 = vmatprep.subr.bf16.mxu0 %v467
        %501 = vmatpush1.bf16.msra.mxu0 %v466
        %502 = vmatprep.subr.bf16.mxu0 %v469
        %503 = vmatpush1.bf16.msra.mxu0 %v468
        %504 = vmatprep.subr.bf16.mxu0 %v471
        %505 = vmatpush1.bf16.msra.mxu0 %v470
        %506 = vmatprep.subr.bf16.mxu0 %v473
        %507 = vmatpush1.bf16.msra.mxu0 %v472
        %508 = vmatprep.subr.bf16.mxu0 %v475
        %509 = vmatpush1.bf16.msra.mxu0 %v474
        %510 = vmatprep.subr.bf16.mxu0 %v477
        %511 = vmatpush1.bf16.msra.mxu0 %v476
        %512 = vmatprep.subr.bf16.mxu0 %v479
        %513 = vmatpush1.bf16.msra.mxu0 %v478
        %514 = vmatprep.subr.bf16.mxu0 %v481
        %515 = vmatpush1.bf16.msra.mxu0 %v480
        %516 = vmatprep.subr.bf16.mxu0 %v483
        %517 = vmatpush1.bf16.msra.mxu0 %v482
        %518 = vmatprep.subr.bf16.mxu0 0
        %519 = vmatpush1.bf16.msra.mxu0 0
        %520 = vmatprep.subr.bf16.mxu0 0
        %521 = vmatpush1.bf16.msra.mxu0 0
        %522 = vmatprep.subr.bf16.mxu0 0
        %523 = vmatpush1.bf16.msra.mxu0 0
        %524 = vmatprep.subr.bf16.mxu0 0
        %525 = vmatpush1.bf16.msra.mxu0 0
        %526 = vmatprep.subr.bf16.mxu0 0
        %527 = vmatpush1.bf16.msra.mxu0 0
        %528 = vmatprep.subr.bf16.mxu0 0
        %529 = vmatpush1.bf16.msra.mxu0 0
        %530 = vmatprep.subr.bf16.mxu0 0
        %531 = vmatpush1.bf16.msra.mxu0 0
        %532 = vmatprep.mubr.bf16.mxu0 %v498
        %533 = vmatmul.mubr.bf16.gmra.mrb[0].mxu0 %v493
        %v534 = vpop.f32.mrb[0].mxu0
        %v535 = vadd.f32 %v488, %v534
        %v536 = vpop.f32.mrb[0].mxu0
        %v537 = vadd.f32 %v488, %v536
        %v538 = vpop.f32.mrb[0].mxu0
        %v539 = vpop.f32.mrb[0].mxu0
        %540 = vdwg.mxu0
        %541 = vst [vmem:[%s230] sm:$0xff] %v535
        %542 = vst [vmem:[%s230 + $0x8] sm:$0xff] %v537
        %s543 = sand.u32 %s120, 1
        %s544 = scalar_lea.sflag [#allocation5], %s543
        %s545 = sand.u32 %s120, 1
        %s546 = smul.addr %s545, 16
        %s547 = scalar_lea.vmem [#allocation6], %s546
        // Predicated region
        $region41: #{tpu_custom_call.1} parent=31 // pred_check
          %p548 = pneg %p130
        $region42: #{tpu_custom_call.1} parent=31 // pred_check_branch
          %550 = sbr.rel (%p548) target = $region44
        $region43: #{tpu_custom_call.1} parent=31 // pred_region
          %s552 = ssub.s32 256, 256
          %553 = vsyncadd %s544, %s552
          %s554 = smul.addr %s25, 2
          %s555 = smul.addr %s24, 2
          %s556 = sadd.s32 %s554, %s555
          %s557 = smul.addr %s556, 128
          %s558 = scalar_lea.hbm %s3, %s557
          %s560 = sshll.u32 %s547, 4
          %s561 = int_to_ptr.vmem [resolvable:$true] %s560
          %563 = dma.vmem_to_hbm [thread:$0]  %s561, 256, %s558, %s544
        $region44: #{tpu_custom_call.1} parent=31 // pred_fallthru
          _
      $region32: #{tpu_custom_call.1} parent=5 // pred_fallthru
        _
      %p564 = scmp.le.s32.totalorder 2, %s15
      // Predicated region
      $region45: #{tpu_custom_call.1} parent=5 // pred_check
        %p565 = pneg %p564
      $region46: #{tpu_custom_call.1} parent=5 // pred_check_branch
        %567 = sbr.rel (%p565) target = $region48
      $region47: #{tpu_custom_call.1} parent=5 // pred_region
        %s568 = ssub.s32 %s15, 2
        // Predicated region
        $region49: #{tpu_custom_call.1} parent=47 // pred_check
          %p569 = pneg %p136
        $region50: #{tpu_custom_call.1} parent=47 // pred_check_branch
          %571 = sbr.rel (%p569) target = $region52
        $region51: #{tpu_custom_call.1} parent=47 // pred_region
          %s572 = sand.u32 %s121, 1
          %s573 = scalar_lea.sflag [#allocation5], %s572
          %s574 = sand.u32 %s121, 1
          %s575 = smul.addr %s574, 16
          %s576 = scalar_lea.vmem [#allocation6], %s575
          %577 = dma.done %s573, 256
        $region52: #{tpu_custom_call.1} parent=47 // pred_fallthru
          _
      $region48: #{tpu_custom_call.1} parent=5 // pred_fallthru
        _
    $region6: #{tpu_custom_call.1} parent=1 // loop_footer
      %s19 = sadd.s32 1, %s15
    $region7: #{tpu_custom_call.1} parent=1 // loop_footer_branch
      %14 = sbr.rel target = $region3
    $region8: #{tpu_custom_call.1} parent=1 // loop_exit
      _
    %578 = vsyncpa [#allocation4], 1
    %s579 = scalar_lea.sflag [#allocation4], 1
    %580 = vsyncpa %s579, 1
    %581 = vsyncpa [#allocation5], 1
    %s582 = scalar_lea.sflag [#allocation5], 1
    %583 = vsyncpa %s582, 1

</llo_original>
